<compile_context>
chip_gen: v7x
topology: tpu7x:2x2x1
jax: 0.10.0
libtpu: 0.0.40
codegen_flags: <defaults>
</compile_context>

<pallas_src>
import functools

import jax
import jax.numpy as jnp
from jax.experimental import pallas as pl
from jax.experimental.pallas import tpu as pltpu


def _round_up(a: int, b: int) -> int:
    return ((a + b - 1) // b) * b


def _cdiv(a: int, b: int) -> int:
    return (a + b - 1) // b


def _tpu_topology():
    """Returns (per-TensorCore VMEM bytes, TensorCores sharing the grid)."""
    vmem = 64 * 1024 * 1024  # conservative fallback (v7x per-core VMEM)
    n_tc = 1
    try:
        info = pltpu.get_tpu_info()
        v = int(getattr(info, "vmem_capacity_bytes", 0) or 0)
        if v > 0:
            vmem = v
    except Exception:
        pass
    try:
        kind = jax.devices()[0].device_kind.lower()
    except Exception:
        kind = ""
    # v7x: two TensorCores per chip, 64 MiB VMEM per core.  Guard against the
    # query reporting per-chip capacity by clamping to the per-core value.
    if ("v7" in kind) or ("7x" in kind):
        n_tc = 2
        vmem = min(vmem, 64 * 1024 * 1024)
    return vmem, n_tc


def _layernorm2d_kernel(x_ref, wb_ref, o_ref, *, eps: float):
    # x_ref : (bn, C, T)  -- batch block, all channels, one spatial lane tile.
    # wb_ref: (C, 2)      -- packed affine params: [:, 0]=weight, [:, 1]=bias.
    #
    # INVARIANT: every op below is independent per (batch row, lane).  Masked
    # boundary blocks (N % bn != 0 or HW % T != 0) contain garbage in padded
    # batch rows / lanes; it never contaminates valid outputs because nothing
    # mixes data across the batch or lane axes (the channel sums below are
    # independent matmul columns).  Do not add cross-lane / cross-batch ops.
    x = x_ref[...].astype(jnp.float32)                       # (bn, C, T)
    bn, c, _ = x.shape
    inv_c = jnp.float32(1.0 / c)

    # Channel sums via a ones-row matmul: runs in the MXU / vector-extended
    # slot instead of VALU reduction adds.  Two-pass variance keeps the same
    # numerics as the PyTorch forward: u = mean(x), s = mean((x-u)^2).
    ones = jnp.ones((bn, 1, c), jnp.float32)
    u = jnp.einsum("boc,bct->bot", ones, x,
                   preferred_element_type=jnp.float32) * inv_c          # (bn,1,T)
    d = x - u
    s = jnp.einsum("boc,bct->bot", ones, d * d,
                   preferred_element_type=jnp.float32) * inv_c          # (bn,1,T)
    y = d * jax.lax.rsqrt(s + eps)                                       # (bn,C,T)

    wb = wb_ref[...].astype(jnp.float32)                     # (C, 2)
    w = wb[:, 0:1][None, :, :]                                # (1, C, 1)
    b = wb[:, 1:2][None, :, :]                                # (1, C, 1)
    o_ref[...] = (w * y + b).astype(o_ref.dtype)


def layer_norm_2d(x, weight, bias, *, eps: float = 1e-6, tile=None,
                  batch_block=None):
    """Channel-wise LayerNorm over NCHW (PyTorch LayerNorm2d forward).

    x: (N, C, H, W); weight/bias: anything broadcastable to (C,) (e.g. the
    module's (1, C, 1, 1) parameters, a (C,) vector, or a scalar for
    affine=False).  Returns (N, C, H, W) in x.dtype.
    """
    N, C, H, W = x.shape
    HW = H * W
    itemsize = jnp.dtype(x.dtype).itemsize

    vmem_per_core, n_tc = _tpu_topology()

    # --- per-block VMEM accounting, including sublane padding ---------------
    sub_io = max(8, 32 // itemsize)       # sublane tile of the I/O dtype
    c_io = _round_up(C, sub_io)           # padded channel rows of in/out bufs
    c_f32 = _round_up(C, 8)               # padded rows of f32 temporaries

    def per_lane_bytes(bn):
        # double-buffered input + double-buffered output + ~4 f32 temporaries
        return bn * (4 * c_io * itemsize + 4 * c_f32 * 4)

    # Packed (C,2) f32 weight/bias block: lane-padded to 128, double-buffered.
    param_bytes = 2 * c_f32 * 128 * 4

    # Working-set target per block: ~3/8 of per-core VMEM (leaves headroom
    # under the vmem_limit below and for compiler scratch).
    budget = max((vmem_per_core * 3) // 8 - param_bytes, 2 << 20)

    hw_lanes = _round_up(HW, 128)

    # --- lane tile: as large as the budget allows (no artificial cap) -------
    if tile is None:
        max_tile = max(128, (budget // per_lane_bytes(1)) // 128 * 128)
        tile = min(hw_lanes, max_tile)
    else:
        tile = min(hw_lanes, max(128, (int(tile) // 128) * 128))
    assert tile % 128 == 0

    # --- batch fold: fill the remaining budget with batch rows --------------
    if batch_block is None:
        if tile >= hw_lanes:
            row_bytes = per_lane_bytes(1) * tile    # VMEM cost per batch row
            bn = min(N, max(1, budget // row_bytes))
        else:
            bn = 1
        # Megacore: make sure every TensorCore gets at least one grid step.
        steps = _cdiv(N, bn) * _cdiv(hw_lanes, tile)
        if n_tc > 1 and steps < n_tc:
            if hw_lanes // 128 >= n_tc:
                tile = max(128, _cdiv(hw_lanes // 128, n_tc) * 128)
            elif N >= n_tc:
                bn = max(1, _cdiv(N, n_tc))
            # else: genuinely single-block problem; nothing worth splitting.
    else:
        bn = max(1, min(int(batch_block), N))

    grid = (_cdiv(N, bn), _cdiv(HW, tile))

    block_bytes = per_lane_bytes(bn) * tile + param_bytes
    vmem_limit = int(min(vmem_per_core - (4 << 20),
                         max(32 << 20, block_bytes + (8 << 20))))

    # --- pack params and launch ---------------------------------------------
    w_flat = jnp.broadcast_to(jnp.asarray(weight, jnp.float32).reshape(-1), (C,))
    b_flat = jnp.broadcast_to(jnp.asarray(bias, jnp.float32).reshape(-1), (C,))
    wb = jnp.stack([w_flat, b_flat], axis=1)                 # (C, 2)

    x2 = x.reshape(N, C, HW)

    out = pl.pallas_call(
        functools.partial(_layernorm2d_kernel, eps=eps),
        out_shape=jax.ShapeDtypeStruct((N, C, HW), x.dtype),
        grid=grid,
        in_specs=[
            pl.BlockSpec((bn, C, tile), lambda i, j: (i, 0, j)),
            pl.BlockSpec((C, 2), lambda i, j: (0, 0)),   # constant-index params
        ],
        out_specs=pl.BlockSpec((bn, C, tile), lambda i, j: (i, 0, j)),
        compiler_params=pltpu.CompilerParams(
            dimension_semantics=("parallel", "parallel"),
            vmem_limit_bytes=vmem_limit,
        ),
    )(x2, wb)

    return out.reshape(N, C, H, W)


def layer_norm_2d_ref(x, weight, bias, eps=1e-6):
    # Pure-JAX reference mirroring the PyTorch forward.
    C = x.shape[1]
    u = jnp.mean(x, axis=1, keepdims=True)
    s = jnp.mean((x - u) ** 2, axis=1, keepdims=True)
    xn = (x - u) / jnp.sqrt(s + eps)
    w = jnp.broadcast_to(jnp.asarray(weight, jnp.float32).reshape(-1), (C,))
    b = jnp.broadcast_to(jnp.asarray(bias, jnp.float32).reshape(-1), (C,))
    return w[None, :, None, None] * xn + b[None, :, None, None]


if __name__ == "__main__":
    key = jax.random.PRNGKey(0)
    k1, k2, k3 = jax.random.split(key, 3)

    # 1) f32, lane-aligned spatial extent, default (ones/zeros) affine params.
    N, C, H, W = 2, 4, 16, 16
    x = jax.random.normal(k1, (N, C, H, W), dtype=jnp.float32)
    weight = jnp.ones((C,), dtype=jnp.float32)
    bias = jnp.zeros((C,), dtype=jnp.float32)
    out = jax.block_until_ready(layer_norm_2d(x, weight, bias, eps=1e-6))
    ref = layer_norm_2d_ref(x, weight, bias, eps=1e-6)
    assert out.shape == (N, C, H, W)
    assert jnp.allclose(out, ref, atol=1e-5, rtol=1e-5)

    # 2) bf16 input, HW=196 (not a multiple of 128 lanes -> masked lane tile),
    #    non-trivial affine params; exercises the batch-folded block.
    xb32 = jax.random.normal(k2, (2, 8, 14, 14), dtype=jnp.float32)
    xb = xb32.astype(jnp.bfloat16)
    wb_ = jnp.linspace(0.5, 1.5, 8, dtype=jnp.float32)
    bb_ = jnp.linspace(-0.1, 0.1, 8, dtype=jnp.float32)
    out_b = jax.block_until_ready(layer_norm_2d(xb, wb_, bb_, eps=1e-6))
    ref_b = layer_norm_2d_ref(xb.astype(jnp.float32), wb_, bb_, eps=1e-6)
    assert out_b.dtype == jnp.bfloat16
    assert out_b.shape == (2, 8, 14, 14)
    assert jnp.allclose(out_b.astype(jnp.float32), ref_b, atol=2e-2, rtol=2e-2)

    # 3) f32, small spatial (7x7), N=5 with an explicit batch_block=2 so the
    #    masked boundary batch block (5 % 2 != 0) path is exercised on any chip.
    xc = jax.random.normal(k3, (5, 16, 7, 7), dtype=jnp.float32)
    wc = jnp.linspace(0.25, 2.0, 16, dtype=jnp.float32)
    bc = jnp.linspace(-0.5, 0.5, 16, dtype=jnp.float32)
    out_c = jax.block_until_ready(
        layer_norm_2d(xc, wc, bc, eps=1e-6, batch_block=2))
    ref_c = layer_norm_2d_ref(xc, wc, bc, eps=1e-6)
    assert jnp.allclose(out_c, ref_c, atol=1e-5, rtol=1e-5)

    print("KERNEL_OK")
</pallas_src>

<mosaic_0001>
module attributes {stable_mosaic.version = 11 : i64} {
  func.func @_layernorm2d_kernel(%arg0: i32, %arg1: i32, %arg2: memref<2x4x256xf32, #tpu.memory_space<vmem>>, %arg3: memref<4x2xf32, #tpu.memory_space<vmem>>, %arg4: memref<2x4x256xf32, #tpu.memory_space<vmem>>) attributes {dimension_semantics = [#tpu.dimension_semantics<parallel>, #tpu.dimension_semantics<parallel>], iteration_bounds = array<i64: 1, 1>, scalar_prefetch = 0 : i64, scratch_operands = 0 : i64, tpu.core_type = #tpu.core_type<tc>, window_params = [{transform_indices = @transform_0, window_bounds = array<i64: 2, 4, 256>}, {pipeline_mode = #tpu.pipeline_mode<synchronous>, transform_indices = @transform_1, window_bounds = array<i64: 4, 2>}, {transform_indices = @transform_2, window_bounds = array<i64: 2, 4, 256>}]} {
    %c0 = arith.constant 0 : index
    %c0_0 = arith.constant 0 : index
    %c0_1 = arith.constant 0 : index
    %0 = vector.load %arg2[%c0, %c0_0, %c0_1] : memref<2x4x256xf32, #tpu.memory_space<vmem>>, vector<2x4x256xf32>
    %cst = arith.constant 1.000000e+00 : f32
    %1 = vector.broadcast %cst : f32 to vector<2x1x4xf32>
    "tpu.trace_start"() <{level = 10 : i32, message = "boc,bct->bot"}> : () -> ()
    %cst_2 = arith.constant dense<0.000000e+00> : vector<2x1x256xf32>
    %2 = tpu.matmul %1, %0, %cst_2 {dimension_numbers = #tpu.dot_dimension_numbers<[2], [1], [1], [2], [0, 0, 0, 1, 1, 2], [0], [0]>} : vector<2x1x4xf32>, vector<2x4x256xf32>, vector<2x1x256xf32> -> vector<2x1x256xf32>
    "tpu.trace_stop"() : () -> ()
    %cst_3 = arith.constant 2.500000e-01 : f32
    %3 = vector.broadcast %cst_3 : f32 to vector<2x1x256xf32>
    %4 = arith.mulf %2, %3 : vector<2x1x256xf32>
    %5 = vector.broadcast %4 : vector<2x1x256xf32> to vector<2x4x256xf32>
    %6 = arith.subf %0, %5 : vector<2x4x256xf32>
    %7 = arith.mulf %6, %6 : vector<2x4x256xf32>
    "tpu.trace_start"() <{level = 10 : i32, message = "boc,bct->bot"}> : () -> ()
    %cst_4 = arith.constant dense<0.000000e+00> : vector<2x1x256xf32>
    %8 = tpu.matmul %1, %7, %cst_4 {dimension_numbers = #tpu.dot_dimension_numbers<[2], [1], [1], [2], [0, 0, 0, 1, 1, 2], [0], [0]>} : vector<2x1x4xf32>, vector<2x4x256xf32>, vector<2x1x256xf32> -> vector<2x1x256xf32>
    "tpu.trace_stop"() : () -> ()
    %cst_5 = arith.constant 2.500000e-01 : f32
    %9 = vector.broadcast %cst_5 : f32 to vector<2x1x256xf32>
    %10 = arith.mulf %8, %9 : vector<2x1x256xf32>
    %cst_6 = arith.constant 9.99999997E-7 : f32
    %11 = vector.broadcast %cst_6 : f32 to vector<2x1x256xf32>
    %12 = arith.addf %10, %11 : vector<2x1x256xf32>
    %13 = math.rsqrt %12 : vector<2x1x256xf32>
    %14 = vector.broadcast %13 : vector<2x1x256xf32> to vector<2x4x256xf32>
    %15 = arith.mulf %6, %14 : vector<2x4x256xf32>
    %c0_7 = arith.constant 0 : index
    %c0_8 = arith.constant 0 : index
    %16 = vector.load %arg3[%c0_7, %c0_8] : memref<4x2xf32, #tpu.memory_space<vmem>>, vector<4x2xf32>
    %17 = vector.extract_strided_slice %16 {offsets = [0, 0], sizes = [4, 1], strides = [1, 1]} : vector<4x2xf32> to vector<4x1xf32>
    %18 = vector.shape_cast %17 : vector<4x1xf32> to vector<1x4x1xf32>
    %19 = vector.extract_strided_slice %16 {offsets = [0, 1], sizes = [4, 1], strides = [1, 1]} : vector<4x2xf32> to vector<4x1xf32>
    %20 = vector.shape_cast %19 : vector<4x1xf32> to vector<1x4x1xf32>
    %21 = vector.broadcast %18 : vector<1x4x1xf32> to vector<2x4x256xf32>
    %22 = arith.mulf %21, %15 : vector<2x4x256xf32>
    %23 = vector.broadcast %20 : vector<1x4x1xf32> to vector<2x4x256xf32>
    %24 = arith.addf %22, %23 : vector<2x4x256xf32>
    %c0_9 = arith.constant 0 : index
    %c0_10 = arith.constant 0 : index
    %c0_11 = arith.constant 0 : index
    %25 = vector.load %arg4[%c0_9, %c0_10, %c0_11] : memref<2x4x256xf32, #tpu.memory_space<vmem>>, vector<2x4x256xf32>
    tpu.vector_store %arg4[%c0_9, %c0_10, %c0_11], %24 {strides = array<i32>} : memref<2x4x256xf32, #tpu.memory_space<vmem>>, vector<2x4x256xf32>,
    return
  }
  func.func @transform_0(%arg0: i32, %arg1: i32) -> (i32, i32, i32) {
    %c0_i32 = arith.constant 0 : i32
    %c0_i32_0 = arith.constant 0 : i32
    return %arg0, %c0_i32, %arg1 : i32, i32, i32
  }
  func.func @transform_1(%arg0: i32, %arg1: i32) -> (i32, i32) {
    %c0_i32 = arith.constant 0 : i32
    %c0_i32_0 = arith.constant 0 : i32
    %c0_i32_1 = arith.constant 0 : i32
    return %c0_i32, %c0_i32_0 : i32, i32
  }
  func.func @transform_2(%arg0: i32, %arg1: i32) -> (i32, i32, i32) {
    %c0_i32 = arith.constant 0 : i32
    %c0_i32_0 = arith.constant 0 : i32
    return %arg0, %c0_i32, %arg1 : i32, i32, i32
  }
}

</mosaic_0001>

<llo_original>
// kernel: tpu_custom_call.1
$region0: #{tpu_custom_call.1}
  #allocation0 [shape = 'u32[]', space=smem, size = 0x4, offset = 0x4, fixed_abs, tag = 'smem constant byte address 0x4 - core index']
  #allocation1 [shape = 'u32[144,128]{1,0:T(1,128)}', space=vmem, size = 0x12000, scoped, tag = 'internal scratch']
  %s0 = inlined_call_operand.hbm [shape: f32[2,4,256], index: 0, kind: input, shape index: {}]
  %s1 = inlined_call_operand.vmem [shape: f32[4,2], index: 1, kind: input, shape index: {}]
  %s2 = inlined_call_operand.hbm [shape: f32[2,4,256], index: 2, kind: output, shape index: {}]
  %s3 = sld [smem:[#allocation0]]
  $region22: #{tpu_custom_call.1} parent=0
    _
  %s5 = ssub.s32 1, %s3
  %s6 = scalar_select 0, %s5, %s3
  $region1: #{tpu_custom_call.1} parent=0
    #allocation2 [shape = 'u8[8192]{0}', space=vmem, size = 0x2000, scoped, tag = 'input window, operand 0, single buffered']
    #allocation3 [shape = 's32[1]{0}', space=sflag, size = 0x4, scoped, tag = 'scoped memory for tpu_custom_call.1']
    #allocation4 [shape = 's32[1]{0}', space=sflag, size = 0x4, scoped, tag = 'scoped memory for tpu_custom_call.1']
    #allocation5 [shape = 'u8[8192]{0}', space=vmem, size = 0x2000, scoped, tag = 'output window, operand 0, single buffered']
    %7 = vsyncpa [#allocation3], 0
    %8 = vsyncpa [#allocation4], 0
    // Predicated region
    $region2: #{tpu_custom_call.1} parent=1 // pred_check
      _
    $region3: #{tpu_custom_call.1} parent=1 // pred_check_branch
      %10 = sbr.rel (0) target = $region5
    $region4: #{tpu_custom_call.1} parent=1 // pred_region
      %s12 = ssub.s32 256, 256
      %13 = vsyncadd [#allocation3], %s12
      %s14 = sshll.u32 [#allocation2], 4
      %s15 = int_to_ptr.vmem [resolvable:$true] %s14
      %20 = dma.hbm_to_vmem [thread:$0]  %s0, 256, %s15, [#allocation3], 128, 128, 8
    $region5: #{tpu_custom_call.1} parent=1 // pred_fallthru
      _
    // Predicated region
    $region6: #{tpu_custom_call.1} parent=1 // pred_check
      _
    $region7: #{tpu_custom_call.1} parent=1 // pred_check_branch
      %22 = sbr.rel (0) target = $region9
    $region8: #{tpu_custom_call.1} parent=1 // pred_region
      _
    $region9: #{tpu_custom_call.1} parent=1 // pred_fallthru
      _
    // Predicated region
    $region10: #{tpu_custom_call.1} parent=1 // pred_check
      _
    $region11: #{tpu_custom_call.1} parent=1 // pred_check_branch
      %24 = sbr.rel (0) target = $region13
    $region12: #{tpu_custom_call.1} parent=1 // pred_region
      %25 = dma.done [#allocation3], 256
    $region13: #{tpu_custom_call.1} parent=1 // pred_fallthru
      _
    %v26 = vld [vmem:[#allocation2] sm:$0xff]
    %v27 = vld [vmem:[#allocation2 + $0x8] sm:$0xff]
    %v29 = vcombine.high %v26, %v26
    %vm30 = vcmask 31744
    %v32 = vsel %vm30, 1.0, 0
    %vm34 = vcmask 1043456
    %v35 = vsel %vm34, %v26, 0
    %v37 = vsel %vm34, %v29, 0
    %39 = vmatprep.subr.mxu0 %v37
    %40 = vmatpush1.msra.mxu0 %v35
    %41 = vmatprep.subr.mxu0 0.0
    %42 = vmatpush1.msra.mxu0 0.0
    %43 = vmatprep.subr.mxu0 0.0
    %44 = vmatpush1.msra.mxu0 0.0
    %45 = vmatprep.subr.mxu0 0.0
    %46 = vmatpush1.msra.mxu0 0.0
    %47 = vmatprep.subr.mxu0 0.0
    %48 = vmatpush1.msra.mxu0 0.0
    %49 = vmatprep.subr.mxu0 0.0
    %50 = vmatpush1.msra.mxu0 0.0
    %51 = vmatprep.subr.mxu0 0.0
    %52 = vmatpush1.msra.mxu0 0.0
    %53 = vmatprep.subr.mxu0 0.0
    %54 = vmatpush1.msra.mxu0 0.0
    %55 = vmatprep.subr.mxu0 0.0
    %56 = vmatpush1.msra.mxu0 0.0
    %57 = vmatprep.subr.mxu0 0.0
    %58 = vmatpush1.msra.mxu0 0.0
    %59 = vmatprep.subr.mxu0 0.0
    %60 = vmatpush1.msra.mxu0 0.0
    %61 = vmatprep.subr.mxu0 0.0
    %62 = vmatpush1.msra.mxu0 0.0
    %63 = vmatprep.subr.mxu0 0.0
    %64 = vmatpush1.msra.mxu0 0.0
    %65 = vmatprep.subr.mxu0 0.0
    %66 = vmatpush1.msra.mxu0 0.0
    %67 = vmatprep.subr.mxu0 0.0
    %68 = vmatpush1.msra.mxu0 0.0
    %69 = vmatprep.subr.mxu0 0.0
    %70 = vmatpush1.msra.mxu0 0.0
    %71 = vmatprep.subr.mxu0 0.0
    %72 = vmatpush1.msra.mxu0 0.0
    %73 = vmatprep.subr.mxu0 0.0
    %74 = vmatpush1.msra.mxu0 0.0
    %75 = vmatprep.subr.mxu0 0.0
    %76 = vmatpush1.msra.mxu0 0.0
    %77 = vmatprep.subr.mxu0 0.0
    %78 = vmatpush1.msra.mxu0 0.0
    %79 = vmatprep.subr.mxu0 0.0
    %80 = vmatpush1.msra.mxu0 0.0
    %81 = vmatprep.subr.mxu0 0.0
    %82 = vmatpush1.msra.mxu0 0.0
    %83 = vmatprep.subr.mxu0 0.0
    %84 = vmatpush1.msra.mxu0 0.0
    %85 = vmatprep.subr.mxu0 0.0
    %86 = vmatpush1.msra.mxu0 0.0
    %87 = vmatprep.subr.mxu0 0.0
    %88 = vmatpush1.msra.mxu0 0.0
    %89 = vmatprep.subr.mxu0 0.0
    %90 = vmatpush1.msra.mxu0 0.0
    %91 = vmatprep.subr.mxu0 0.0
    %92 = vmatpush1.msra.mxu0 0.0
    %93 = vmatprep.subr.mxu0 0.0
    %94 = vmatpush1.msra.mxu0 0.0
    %95 = vmatprep.subr.mxu0 0.0
    %96 = vmatpush1.msra.mxu0 0.0
    %97 = vmatprep.subr.mxu0 0.0
    %98 = vmatpush1.msra.mxu0 0.0
    %99 = vmatprep.subr.mxu0 0.0
    %100 = vmatpush1.msra.mxu0 0.0
    %101 = vmatprep.subr.mxu0 0.0
    %102 = vmatpush1.msra.mxu0 0.0
    %103 = vmatprep.mubr.f32.mxu0 0.0
    %104 = vmatmul.mubr.f32.gmra.mrb[0].mxu0 %v32
    %v105 = vpop.f32.mrb[0].mxu0
    %v106 = vadd.f32 0.0, %v105
    %v107 = vpop.f32.mrb[0].mxu0
    %v108 = vadd.f32 0.0, %v107
    %109 = vdwg.mxu0
    %v111 = vcombine.high %v27, %v27
    %v112 = vsel %vm34, %v27, 0
    %v114 = vsel %vm34, %v111, 0
    %116 = vmatprep.subr.mxu0 %v114
    %117 = vmatpush1.msra.mxu0 %v112
    %118 = vmatprep.subr.mxu0 0.0
    %119 = vmatpush1.msra.mxu0 0.0
    %120 = vmatprep.subr.mxu0 0.0
    %121 = vmatpush1.msra.mxu0 0.0
    %122 = vmatprep.subr.mxu0 0.0
    %123 = vmatpush1.msra.mxu0 0.0
    %124 = vmatprep.subr.mxu0 0.0
    %125 = vmatpush1.msra.mxu0 0.0
    %126 = vmatprep.subr.mxu0 0.0
    %127 = vmatpush1.msra.mxu0 0.0
    %128 = vmatprep.subr.mxu0 0.0
    %129 = vmatpush1.msra.mxu0 0.0
    %130 = vmatprep.subr.mxu0 0.0
    %131 = vmatpush1.msra.mxu0 0.0
    %132 = vmatprep.subr.mxu0 0.0
    %133 = vmatpush1.msra.mxu0 0.0
    %134 = vmatprep.subr.mxu0 0.0
    %135 = vmatpush1.msra.mxu0 0.0
    %136 = vmatprep.subr.mxu0 0.0
    %137 = vmatpush1.msra.mxu0 0.0
    %138 = vmatprep.subr.mxu0 0.0
    %139 = vmatpush1.msra.mxu0 0.0
    %140 = vmatprep.subr.mxu0 0.0
    %141 = vmatpush1.msra.mxu0 0.0
    %142 = vmatprep.subr.mxu0 0.0
    %143 = vmatpush1.msra.mxu0 0.0
    %144 = vmatprep.subr.mxu0 0.0
    %145 = vmatpush1.msra.mxu0 0.0
    %146 = vmatprep.subr.mxu0 0.0
    %147 = vmatpush1.msra.mxu0 0.0
    %148 = vmatprep.subr.mxu0 0.0
    %149 = vmatpush1.msra.mxu0 0.0
    %150 = vmatprep.subr.mxu0 0.0
    %151 = vmatpush1.msra.mxu0 0.0
    %152 = vmatprep.subr.mxu0 0.0
    %153 = vmatpush1.msra.mxu0 0.0
    %154 = vmatprep.subr.mxu0 0.0
    %155 = vmatpush1.msra.mxu0 0.0
    %156 = vmatprep.subr.mxu0 0.0
    %157 = vmatpush1.msra.mxu0 0.0
    %158 = vmatprep.subr.mxu0 0.0
    %159 = vmatpush1.msra.mxu0 0.0
    %160 = vmatprep.subr.mxu0 0.0
    %161 = vmatpush1.msra.mxu0 0.0
    %162 = vmatprep.subr.mxu0 0.0
    %163 = vmatpush1.msra.mxu0 0.0
    %164 = vmatprep.subr.mxu0 0.0
    %165 = vmatpush1.msra.mxu0 0.0
    %166 = vmatprep.subr.mxu0 0.0
    %167 = vmatpush1.msra.mxu0 0.0
    %168 = vmatprep.subr.mxu0 0.0
    %169 = vmatpush1.msra.mxu0 0.0
    %170 = vmatprep.subr.mxu0 0.0
    %171 = vmatpush1.msra.mxu0 0.0
    %172 = vmatprep.subr.mxu0 0.0
    %173 = vmatpush1.msra.mxu0 0.0
    %174 = vmatprep.subr.mxu0 0.0
    %175 = vmatpush1.msra.mxu0 0.0
    %176 = vmatprep.subr.mxu0 0.0
    %177 = vmatpush1.msra.mxu0 0.0
    %178 = vmatprep.subr.mxu0 0.0
    %179 = vmatpush1.msra.mxu0 0.0
    %180 = vmatprep.mubr.f32.mxu0 0.0
    %181 = vmatmul.mubr.f32.gmra.mrb[0].mxu0 %v32
    %v182 = vpop.f32.mrb[0].mxu0
    %v183 = vadd.f32 0.0, %v182
    %v184 = vpop.f32.mrb[0].mxu0
    %v185 = vadd.f32 0.0, %v184
    %186 = vdwg.mxu0
    %v187 = vmul.f32 %v106, 0.25
    %v188 = vmul.f32 %v108, 0.25
    %v189 = vmul.f32 %v183, 0.25
    %v190 = vmul.f32 %v185, 0.25
    %v191 = vlaneseq
    %v192 = vshrl.u32 %v191, 7
    %v193 = vsub.s32 0, %v192
    %v194 = vrot.slane %v187, %v193
    %v195 = vlaneseq
    %v196 = vshrl.u32 %v195, 7
    %v197 = vsub.s32 0, %v196
    %v198 = vrot.slane %v188, %v197
    %v199 = vlaneseq
    %v200 = vshrl.u32 %v199, 7
    %v201 = vsub.s32 0, %v200
    %v202 = vrot.slane %v189, %v201
    %v203 = vlaneseq
    %v204 = vshrl.u32 %v203, 7
    %v205 = vsub.s32 0, %v204
    %v206 = vrot.slane %v190, %v205
    %v211 = vcombine.low %v194, %v198
    %v212 = vcombine.low %v202, %v206
    %v215 = vsub.f32 %v26, %v211
    %v216 = vsub.f32 %v27, %v212
    %v217 = vmul.f32 %v215, %v215
    %v218 = vmul.f32 %v216, %v216
    %v220 = vcombine.high %v217, %v217
    %v221 = vsel %vm34, %v217, 0
    %v223 = vsel %vm34, %v220, 0
    %225 = vmatprep.subr.mxu0 %v223
    %226 = vmatpush1.msra.mxu0 %v221
    %227 = vmatprep.subr.mxu0 0.0
    %228 = vmatpush1.msra.mxu0 0.0
    %229 = vmatprep.subr.mxu0 0.0
    %230 = vmatpush1.msra.mxu0 0.0
    %231 = vmatprep.subr.mxu0 0.0
    %232 = vmatpush1.msra.mxu0 0.0
    %233 = vmatprep.subr.mxu0 0.0
    %234 = vmatpush1.msra.mxu0 0.0
    %235 = vmatprep.subr.mxu0 0.0
    %236 = vmatpush1.msra.mxu0 0.0
    %237 = vmatprep.subr.mxu0 0.0
    %238 = vmatpush1.msra.mxu0 0.0
    %239 = vmatprep.subr.mxu0 0.0
    %240 = vmatpush1.msra.mxu0 0.0
    %241 = vmatprep.subr.mxu0 0.0
    %242 = vmatpush1.msra.mxu0 0.0
    %243 = vmatprep.subr.mxu0 0.0
    %244 = vmatpush1.msra.mxu0 0.0
    %245 = vmatprep.subr.mxu0 0.0
    %246 = vmatpush1.msra.mxu0 0.0
    %247 = vmatprep.subr.mxu0 0.0
    %248 = vmatpush1.msra.mxu0 0.0
    %249 = vmatprep.subr.mxu0 0.0
    %250 = vmatpush1.msra.mxu0 0.0
    %251 = vmatprep.subr.mxu0 0.0
    %252 = vmatpush1.msra.mxu0 0.0
    %253 = vmatprep.subr.mxu0 0.0
    %254 = vmatpush1.msra.mxu0 0.0
    %255 = vmatprep.subr.mxu0 0.0
    %256 = vmatpush1.msra.mxu0 0.0
    %257 = vmatprep.subr.mxu0 0.0
    %258 = vmatpush1.msra.mxu0 0.0
    %259 = vmatprep.subr.mxu0 0.0
    %260 = vmatpush1.msra.mxu0 0.0
    %261 = vmatprep.subr.mxu0 0.0
    %262 = vmatpush1.msra.mxu0 0.0
    %263 = vmatprep.subr.mxu0 0.0
    %264 = vmatpush1.msra.mxu0 0.0
    %265 = vmatprep.subr.mxu0 0.0
    %266 = vmatpush1.msra.mxu0 0.0
    %267 = vmatprep.subr.mxu0 0.0
    %268 = vmatpush1.msra.mxu0 0.0
    %269 = vmatprep.subr.mxu0 0.0
    %270 = vmatpush1.msra.mxu0 0.0
    %271 = vmatprep.subr.mxu0 0.0
    %272 = vmatpush1.msra.mxu0 0.0
    %273 = vmatprep.subr.mxu0 0.0
    %274 = vmatpush1.msra.mxu0 0.0
    %275 = vmatprep.subr.mxu0 0.0
    %276 = vmatpush1.msra.mxu0 0.0
    %277 = vmatprep.subr.mxu0 0.0
    %278 = vmatpush1.msra.mxu0 0.0
    %279 = vmatprep.subr.mxu0 0.0
    %280 = vmatpush1.msra.mxu0 0.0
    %281 = vmatprep.subr.mxu0 0.0
    %282 = vmatpush1.msra.mxu0 0.0
    %283 = vmatprep.subr.mxu0 0.0
    %284 = vmatpush1.msra.mxu0 0.0
    %285 = vmatprep.subr.mxu0 0.0
    %286 = vmatpush1.msra.mxu0 0.0
    %287 = vmatprep.subr.mxu0 0.0
    %288 = vmatpush1.msra.mxu0 0.0
    %289 = vmatprep.mubr.f32.mxu0 0.0
    %290 = vmatmul.mubr.f32.gmra.mrb[0].mxu0 %v32
    %v291 = vpop.f32.mrb[0].mxu0
    %v292 = vadd.f32 0.0, %v291
    %v293 = vpop.f32.mrb[0].mxu0
    %v294 = vadd.f32 0.0, %v293
    %295 = vdwg.mxu0
    %v297 = vcombine.high %v218, %v218
    %v298 = vsel %vm34, %v218, 0
    %v300 = vsel %vm34, %v297, 0
    %302 = vmatprep.subr.mxu0 %v300
    %303 = vmatpush1.msra.mxu0 %v298
    %304 = vmatprep.subr.mxu0 0.0
    %305 = vmatpush1.msra.mxu0 0.0
    %306 = vmatprep.subr.mxu0 0.0
    %307 = vmatpush1.msra.mxu0 0.0
    %308 = vmatprep.subr.mxu0 0.0
    %309 = vmatpush1.msra.mxu0 0.0
    %310 = vmatprep.subr.mxu0 0.0
    %311 = vmatpush1.msra.mxu0 0.0
    %312 = vmatprep.subr.mxu0 0.0
    %313 = vmatpush1.msra.mxu0 0.0
    %314 = vmatprep.subr.mxu0 0.0
    %315 = vmatpush1.msra.mxu0 0.0
    %316 = vmatprep.subr.mxu0 0.0
    %317 = vmatpush1.msra.mxu0 0.0
    %318 = vmatprep.subr.mxu0 0.0
    %319 = vmatpush1.msra.mxu0 0.0
    %320 = vmatprep.subr.mxu0 0.0
    %321 = vmatpush1.msra.mxu0 0.0
    %322 = vmatprep.subr.mxu0 0.0
    %323 = vmatpush1.msra.mxu0 0.0
    %324 = vmatprep.subr.mxu0 0.0
    %325 = vmatpush1.msra.mxu0 0.0
    %326 = vmatprep.subr.mxu0 0.0
    %327 = vmatpush1.msra.mxu0 0.0
    %328 = vmatprep.subr.mxu0 0.0
    %329 = vmatpush1.msra.mxu0 0.0
    %330 = vmatprep.subr.mxu0 0.0
    %331 = vmatpush1.msra.mxu0 0.0
    %332 = vmatprep.subr.mxu0 0.0
    %333 = vmatpush1.msra.mxu0 0.0
    %334 = vmatprep.subr.mxu0 0.0
    %335 = vmatpush1.msra.mxu0 0.0
    %336 = vmatprep.subr.mxu0 0.0
    %337 = vmatpush1.msra.mxu0 0.0
    %338 = vmatprep.subr.mxu0 0.0
    %339 = vmatpush1.msra.mxu0 0.0
    %340 = vmatprep.subr.mxu0 0.0
    %341 = vmatpush1.msra.mxu0 0.0
    %342 = vmatprep.subr.mxu0 0.0
    %343 = vmatpush1.msra.mxu0 0.0
    %344 = vmatprep.subr.mxu0 0.0
    %345 = vmatpush1.msra.mxu0 0.0
    %346 = vmatprep.subr.mxu0 0.0
    %347 = vmatpush1.msra.mxu0 0.0
    %348 = vmatprep.subr.mxu0 0.0
    %349 = vmatpush1.msra.mxu0 0.0
    %350 = vmatprep.subr.mxu0 0.0
    %351 = vmatpush1.msra.mxu0 0.0
    %352 = vmatprep.subr.mxu0 0.0
    %353 = vmatpush1.msra.mxu0 0.0
    %354 = vmatprep.subr.mxu0 0.0
    %355 = vmatpush1.msra.mxu0 0.0
    %356 = vmatprep.subr.mxu0 0.0
    %357 = vmatpush1.msra.mxu0 0.0
    %358 = vmatprep.subr.mxu0 0.0
    %359 = vmatpush1.msra.mxu0 0.0
    %360 = vmatprep.subr.mxu0 0.0
    %361 = vmatpush1.msra.mxu0 0.0
    %362 = vmatprep.subr.mxu0 0.0
    %363 = vmatpush1.msra.mxu0 0.0
    %364 = vmatprep.subr.mxu0 0.0
    %365 = vmatpush1.msra.mxu0 0.0
    %366 = vmatprep.mubr.f32.mxu0 0.0
    %367 = vmatmul.mubr.f32.gmra.mrb[0].mxu0 %v32
    %v368 = vpop.f32.mrb[0].mxu0
    %v369 = vadd.f32 0.0, %v368
    %v370 = vpop.f32.mrb[0].mxu0
    %v371 = vadd.f32 0.0, %v370
    %372 = vdwg.mxu0
    %v373 = vmul.f32 %v292, 0.25
    %v374 = vmul.f32 %v294, 0.25
    %v375 = vmul.f32 %v369, 0.25
    %v376 = vmul.f32 %v371, 0.25
    %v377 = vadd.f32 %v373, 1e-06
    %v378 = vadd.f32 %v374, 1e-06
    %v379 = vadd.f32 %v375, 1e-06
    %v380 = vadd.f32 %v376, 1e-06
    %v381 = vrsqrt.pop %v377
    %v382 = vrsqrt.pop %v378
    %v383 = vrsqrt.pop %v379
    %v384 = vrsqrt.pop %v380
    %v385 = vlaneseq
    %v386 = vshrl.u32 %v385, 7
    %v387 = vsub.s32 0, %v386
    %v388 = vrot.slane %v381, %v387
    %v389 = vlaneseq
    %v390 = vshrl.u32 %v389, 7
    %v391 = vsub.s32 0, %v390
    %v392 = vrot.slane %v382, %v391
    %v393 = vlaneseq
    %v394 = vshrl.u32 %v393, 7
    %v395 = vsub.s32 0, %v394
    %v396 = vrot.slane %v383, %v395
    %v397 = vlaneseq
    %v398 = vshrl.u32 %v397, 7
    %v399 = vsub.s32 0, %v398
    %v400 = vrot.slane %v384, %v399
    %v405 = vcombine.low %v388, %v392
    %v406 = vcombine.low %v396, %v400
    %v409 = vmul.f32 %v215, %v405
    %v410 = vmul.f32 %v216, %v406
    %v411 = vld [vmem:[%s1] sm:$0xf]
    %413 = vset.pattern.permute.xlu0 0
    %414 = vperm.xlu0 %413, %v411
    %v415 = vpop.permute.xlu0 %414
    %v419 = vcombine.high %v409, %v409
    %v420 = vcombine.high %v410, %v410
    %v423 = vmul.f32 %v415, %v409
    %v424 = vmul.f32 %v415, %v419
    %v425 = vmul.f32 %v415, %v410
    %v426 = vmul.f32 %v415, %v420
    %427 = vset.pattern.permute.xlu0 1
    %428 = vperm.xlu0 %427, %v411
    %v429 = vpop.permute.xlu0 %428
    %v431 = vadd.f32 %v423, %v429
    %v432 = vadd.f32 %v424, %v429
    %v433 = vadd.f32 %v425, %v429
    %v434 = vadd.f32 %v426, %v429
    %v439 = vcombine.low %v431, %v432
    %v440 = vcombine.low %v433, %v434
    %443 = vst [vmem:[#allocation5] sm:$0xff] %v439
    %444 = vst [vmem:[#allocation5 + $0x8] sm:$0xff] %v440
    // Predicated region
    $region14: #{tpu_custom_call.1} parent=1 // pred_check
      _
    $region15: #{tpu_custom_call.1} parent=1 // pred_check_branch
      %446 = sbr.rel (0) target = $region17
    $region16: #{tpu_custom_call.1} parent=1 // pred_region
      %s448 = ssub.s32 256, 256
      %449 = vsyncadd [#allocation4], %s448
      %s450 = sshll.u32 [#allocation5], 4
      %s451 = int_to_ptr.vmem [resolvable:$true] %s450
      %456 = dma.vmem_to_hbm [thread:$0]  %s451, 256, %s2, [#allocation4], 128, 128, 8
    $region17: #{tpu_custom_call.1} parent=1 // pred_fallthru
      _
    // Predicated region
    $region18: #{tpu_custom_call.1} parent=1 // pred_check
      _
    $region19: #{tpu_custom_call.1} parent=1 // pred_check_branch
      %458 = sbr.rel (0) target = $region21
    $region20: #{tpu_custom_call.1} parent=1 // pred_region
      %459 = dma.done [#allocation4], 256
    $region21: #{tpu_custom_call.1} parent=1 // pred_fallthru
      _
    %460 = vsyncpa [#allocation3], 1
    %461 = vsyncpa [#allocation4], 1

</llo_original>
